<compile_context>
chip_gen: v7x
topology: tpu7x:2x2x1
jax: 0.10.0
libtpu: 0.0.40
codegen_flags: <defaults>
</compile_context>

<pallas_src>
import functools

import jax
import jax.numpy as jnp
from jax.experimental import pallas as pl
from jax.experimental.pallas import tpu as pltpu

LANES = 128          # last-dim vreg width
SUBLANES = 8         # f32 sublane tile
MAX_ROW_BLOCK = 1024 # (1024, 128) f32 block = 512 KiB per input per buffer


def _vfl_kernel(pred_ref, gt_ref, label_ref, out_ref, *, alpha, gamma):
    """One block of elementwise varifocal loss + partial (8,128) reduction."""
    x = pred_ref[...].astype(jnp.float32)     # logits
    z = gt_ref[...].astype(jnp.float32)       # gt_score (soft target)
    lbl = label_ref[...].astype(jnp.float32)  # label

    # Shared transcendental: e = exp(-|x|) feeds both sigmoid and log1p.
    e = jnp.exp(-jnp.abs(x))
    inv = 1.0 / (1.0 + e)
    sig = jnp.where(x >= 0.0, inv, e * inv)   # numerically stable sigmoid

    # sigmoid(x) ** gamma -- repeated multiply for small integer gamma.
    g = float(gamma)
    if g == int(g) and 1 <= int(g) <= 8:
        sig_pow = sig
        for _ in range(int(g) - 1):
            sig_pow = sig_pow * sig
    elif g == 0.0:
        sig_pow = jnp.ones_like(sig)
    else:
        sig_pow = jnp.power(sig, g)

    weight = alpha * sig_pow * (1.0 - lbl) + z * lbl

    # binary_cross_entropy_with_logits, reduction='none':
    #   max(x, 0) - x*z + log1p(exp(-|x|))
    bce = jnp.maximum(x, 0.0) - x * z + jnp.log1p(e)

    prod = bce * weight                                  # (row_blk, 128)
    r = prod.shape[0]
    # Collapse onto a single (8, 128) vreg tile with cheap VPU adds; the
    # cross-lane/sublane reduction to a scalar happens once, in the wrapper.
    out_ref[...] = prod.reshape(r // SUBLANES, SUBLANES, LANES).sum(axis=0)


def varifocal_loss(pred_score, gt_score, label, alpha=0.75, gamma=2.0):
    """Pallas wrapper: returns the scalar varifocal loss (float32)."""
    n = pred_score.size
    rows = pl.cdiv(n, LANES)
    rows8 = pl.cdiv(rows, SUBLANES) * SUBLANES
    row_blk = min(MAX_ROW_BLOCK, rows8)              # multiple of 8 by construction
    rows_padded = pl.cdiv(rows8, row_blk) * row_blk
    n_padded = rows_padded * LANES
    n_blocks = rows_padded // row_blk

    def flatten_pad(a, pad_value):
        a = jnp.ravel(a)                             # keep native dtype (no f32 upcast)
        a = jnp.pad(a, (0, n_padded - n), constant_values=pad_value)
        return a.reshape(rows_padded, LANES)

    # Padding scheme removes the need for a mask stream:
    #   pred = -30 (large negative, finite), gt = label = 0
    #   -> weight ~ alpha * sigmoid(-30)^gamma ~ 0, bce ~ 1e-13 -> contribution ~ 0.
    pred2 = flatten_pad(pred_score, -30.0)
    gt2 = flatten_pad(gt_score, 0)
    lbl2 = flatten_pad(label, 0)

    in_spec = pl.BlockSpec((row_blk, LANES), lambda i: (i, 0))

    partials = pl.pallas_call(
        functools.partial(_vfl_kernel, alpha=float(alpha), gamma=float(gamma)),
        out_shape=jax.ShapeDtypeStruct((n_blocks * SUBLANES, LANES), jnp.float32),
        grid_spec=pltpu.PrefetchScalarGridSpec(
            num_scalar_prefetch=0,
            grid=(n_blocks,),
            in_specs=[in_spec, in_spec, in_spec],
            out_specs=pl.BlockSpec((SUBLANES, LANES), lambda i: (i, 0)),
        ),
        compiler_params=pltpu.CompilerParams(
            dimension_semantics=("parallel",)),       # independent blocks; megacore-friendly
    )(pred2, gt2, lbl2)

    return jnp.sum(partials)


def _reference(pred_score, gt_score, label, alpha=0.75, gamma=2.0):
    x = pred_score.astype(jnp.float32)
    z = gt_score.astype(jnp.float32)
    lbl = label.astype(jnp.float32)
    weight = alpha * jax.nn.sigmoid(x) ** gamma * (1.0 - lbl) + z * lbl
    bce = jnp.maximum(x, 0.0) - x * z + jnp.log1p(jnp.exp(-jnp.abs(x)))
    return jnp.sum(bce * weight)


if __name__ == "__main__":
    key = jax.random.PRNGKey(0)
    k1, k2, k3 = jax.random.split(key, 3)

    B, A, C = 2, 64, 16  # batch, anchors, classes
    pred_score = jax.random.normal(k1, (B, A, C), dtype=jnp.float32) * 2.0
    gt_score = jax.random.uniform(k2, (B, A, C), dtype=jnp.float32)
    label = (jax.random.uniform(k3, (B, A, C)) > 0.7).astype(jnp.float32)

    loss = varifocal_loss(pred_score, gt_score, label)
    loss = jax.block_until_ready(loss)

    ref = _reference(pred_score, gt_score, label)
    assert jnp.allclose(loss, ref, rtol=1e-4, atol=1e-3), (loss, ref)

    print("KERNEL_OK")
</pallas_src>

<mosaic_0001>
module attributes {stable_mosaic.version = 11 : i64} {
  func.func @_vfl_kernel(%arg0: i32, %arg1: memref<16x128xf32, #tpu.memory_space<vmem>>, %arg2: memref<16x128xf32, #tpu.memory_space<vmem>>, %arg3: memref<16x128xf32, #tpu.memory_space<vmem>>, %arg4: memref<8x128xf32, #tpu.memory_space<vmem>>) attributes {dimension_semantics = [#tpu.dimension_semantics<parallel>], iteration_bounds = array<i64: 1>, scalar_prefetch = 0 : i64, scratch_operands = 0 : i64, tpu.core_type = #tpu.core_type<tc>, window_params = [{transform_indices = @transform_0, window_bounds = array<i64: 16, 128>}, {transform_indices = @transform_1, window_bounds = array<i64: 16, 128>}, {transform_indices = @transform_2, window_bounds = array<i64: 16, 128>}, {transform_indices = @transform_3, window_bounds = array<i64: 8, 128>}]} {
    %c0 = arith.constant 0 : index
    %c0_0 = arith.constant 0 : index
    %0 = vector.load %arg1[%c0, %c0_0] : memref<16x128xf32, #tpu.memory_space<vmem>>, vector<16x128xf32>
    %c0_1 = arith.constant 0 : index
    %c0_2 = arith.constant 0 : index
    %1 = vector.load %arg2[%c0_1, %c0_2] : memref<16x128xf32, #tpu.memory_space<vmem>>, vector<16x128xf32>
    %c0_3 = arith.constant 0 : index
    %c0_4 = arith.constant 0 : index
    %2 = vector.load %arg3[%c0_3, %c0_4] : memref<16x128xf32, #tpu.memory_space<vmem>>, vector<16x128xf32>
    %3 = math.absf %0 : vector<16x128xf32>
    %cst = arith.constant 0.000000e+00 : f32
    %4 = vector.broadcast %cst : f32 to vector<16x128xf32>
    %5 = arith.subf %4, %3 : vector<16x128xf32>
    %6 = math.exp %5 : vector<16x128xf32>
    %cst_5 = arith.constant 1.000000e+00 : f32
    %7 = vector.broadcast %cst_5 : f32 to vector<16x128xf32>
    %8 = arith.addf %7, %6 : vector<16x128xf32>
    %cst_6 = arith.constant 1.000000e+00 : f32
    %9 = vector.broadcast %cst_6 : f32 to vector<16x128xf32>
    %10 = arith.divf %9, %8 : vector<16x128xf32>
    %cst_7 = arith.constant 0.000000e+00 : f32
    %11 = vector.broadcast %cst_7 : f32 to vector<16x128xf32>
    %12 = arith.cmpf oge, %0, %11 : vector<16x128xf32>
    %13 = arith.mulf %6, %10 : vector<16x128xf32>
    %14 = arith.select %12, %10, %13 : vector<16x128xi1>, vector<16x128xf32>
    %15 = arith.mulf %14, %14 : vector<16x128xf32>
    %cst_8 = arith.constant 7.500000e-01 : f32
    %16 = vector.broadcast %cst_8 : f32 to vector<16x128xf32>
    %17 = arith.mulf %16, %15 : vector<16x128xf32>
    %cst_9 = arith.constant 1.000000e+00 : f32
    %18 = vector.broadcast %cst_9 : f32 to vector<16x128xf32>
    %19 = arith.subf %18, %2 : vector<16x128xf32>
    %20 = arith.mulf %17, %19 : vector<16x128xf32>
    %21 = arith.mulf %1, %2 : vector<16x128xf32>
    %22 = arith.addf %20, %21 : vector<16x128xf32>
    %cst_10 = arith.constant 0.000000e+00 : f32
    %23 = vector.broadcast %cst_10 : f32 to vector<16x128xf32>
    %24 = arith.maximumf %0, %23 : vector<16x128xf32>
    %25 = arith.mulf %0, %1 : vector<16x128xf32>
    %26 = arith.subf %24, %25 : vector<16x128xf32>
    %27 = math.log1p %6 : vector<16x128xf32>
    %28 = arith.addf %26, %27 : vector<16x128xf32>
    %29 = arith.mulf %28, %22 : vector<16x128xf32>
    %30 = vector.shape_cast %29 : vector<16x128xf32> to vector<2x8x128xf32>
    %cst_11 = arith.constant dense<0.000000e+00> : vector<8x128xf32>
    %31 = vector.multi_reduction <add>, %30, %cst_11 [0] : vector<2x8x128xf32> to vector<8x128xf32>
    %c0_12 = arith.constant 0 : index
    %c0_13 = arith.constant 0 : index
    %32 = vector.load %arg4[%c0_12, %c0_13] : memref<8x128xf32, #tpu.memory_space<vmem>>, vector<8x128xf32>
    tpu.vector_store %arg4[%c0_12, %c0_13], %31 {strides = array<i32>} : memref<8x128xf32, #tpu.memory_space<vmem>>, vector<8x128xf32>,
    return
  }
  func.func @transform_0(%arg0: i32) -> (i32, i32) {
    %c0_i32 = arith.constant 0 : i32
    %c0_i32_0 = arith.constant 0 : i32
    return %arg0, %c0_i32 : i32, i32
  }
  func.func @transform_1(%arg0: i32) -> (i32, i32) {
    %c0_i32 = arith.constant 0 : i32
    %c0_i32_0 = arith.constant 0 : i32
    return %arg0, %c0_i32 : i32, i32
  }
  func.func @transform_2(%arg0: i32) -> (i32, i32) {
    %c0_i32 = arith.constant 0 : i32
    %c0_i32_0 = arith.constant 0 : i32
    return %arg0, %c0_i32 : i32, i32
  }
  func.func @transform_3(%arg0: i32) -> (i32, i32) {
    %c0_i32 = arith.constant 0 : i32
    %c0_i32_0 = arith.constant 0 : i32
    return %arg0, %c0_i32 : i32, i32
  }
}

</mosaic_0001>

<llo_original>
// kernel: tpu_custom_call.1
$region0: #{tpu_custom_call.1}
  #allocation0 [shape = 'u32[]', space=smem, size = 0x4, offset = 0x4, fixed_abs, tag = 'smem constant byte address 0x4 - core index']
  #allocation1 [shape = 'u32[144,128]{1,0:T(1,128)}', space=vmem, size = 0x12000, scoped, tag = 'internal scratch']
  %s0 = inlined_call_operand.hbm [shape: f32[16,128], index: 0, kind: input, shape index: {}]
  %s1 = inlined_call_operand.hbm [shape: f32[16,128], index: 1, kind: input, shape index: {}]
  %s2 = inlined_call_operand.hbm [shape: f32[16,128], index: 2, kind: input, shape index: {}]
  %s3 = inlined_call_operand.hbm [shape: f32[8,128], index: 3, kind: output, shape index: {}]
  %s4 = sld [smem:[#allocation0]]
  $region34: #{tpu_custom_call.1} parent=0
    _
  %s6 = ssub.s32 1, %s4
  %s7 = scalar_select 0, %s6, %s4
  $region1: #{tpu_custom_call.1} parent=0
    #allocation2 [shape = 'u8[8192]{0}', space=vmem, size = 0x2000, scoped, tag = 'input window, operand 0, single buffered']
    #allocation3 [shape = 's32[1]{0}', space=sflag, size = 0x4, scoped, tag = 'scoped memory for tpu_custom_call.1']
    #allocation4 [shape = 's32[1]{0}', space=sflag, size = 0x4, scoped, tag = 'scoped memory for tpu_custom_call.1']
    #allocation5 [shape = 'u8[8192]{0}', space=vmem, size = 0x2000, scoped, tag = 'input window, operand 1, single buffered']
    #allocation6 [shape = 's32[1]{0}', space=sflag, size = 0x4, scoped, tag = 'scoped memory for tpu_custom_call.1']
    #allocation7 [shape = 'u8[8192]{0}', space=vmem, size = 0x2000, scoped, tag = 'input window, operand 2, single buffered']
    #allocation8 [shape = 'u8[4096]{0}', space=vmem, size = 0x1000, scoped, tag = 'output window, operand 0, single buffered']
    %8 = vsyncpa [#allocation3], 0
    %9 = vsyncpa [#allocation6], 0
    %10 = vsyncpa [#allocation4], 0
    // Predicated region
    $region2: #{tpu_custom_call.1} parent=1 // pred_check
      _
    $region3: #{tpu_custom_call.1} parent=1 // pred_check_branch
      %12 = sbr.rel (0) target = $region5
    $region4: #{tpu_custom_call.1} parent=1 // pred_region
      %s14 = ssub.s32 256, 256
      %15 = vsyncadd [#allocation3], %s14
      %s16 = sshll.u32 [#allocation2], 4
      %s17 = int_to_ptr.vmem [resolvable:$true] %s16
      %22 = dma.hbm_to_vmem [thread:$0]  %s0, 256, %s17, [#allocation3], 128, 128, 8
    $region5: #{tpu_custom_call.1} parent=1 // pred_fallthru
      _
    // Predicated region
    $region6: #{tpu_custom_call.1} parent=1 // pred_check
      _
    $region7: #{tpu_custom_call.1} parent=1 // pred_check_branch
      %24 = sbr.rel (0) target = $region9
    $region8: #{tpu_custom_call.1} parent=1 // pred_region
      %s26 = ssub.s32 256, 256
      %27 = vsyncadd [#allocation6], %s26
      %s28 = sshll.u32 [#allocation5], 4
      %s29 = int_to_ptr.vmem [resolvable:$true] %s28
      %34 = dma.hbm_to_vmem [thread:$0]  %s1, 256, %s29, [#allocation6], 128, 128, 8
    $region9: #{tpu_custom_call.1} parent=1 // pred_fallthru
      _
    // Predicated region
    $region10: #{tpu_custom_call.1} parent=1 // pred_check
      _
    $region11: #{tpu_custom_call.1} parent=1 // pred_check_branch
      %36 = sbr.rel (0) target = $region13
    $region12: #{tpu_custom_call.1} parent=1 // pred_region
      %s38 = ssub.s32 256, 256
      %39 = vsyncadd [#allocation6], %s38
      %s40 = sshll.u32 [#allocation7], 4
      %s41 = int_to_ptr.vmem [resolvable:$true] %s40
      %46 = dma.hbm_to_vmem [thread:$0]  %s2, 256, %s41, [#allocation6], 128, 128, 8
    $region13: #{tpu_custom_call.1} parent=1 // pred_fallthru
      _
    // Predicated region
    $region14: #{tpu_custom_call.1} parent=1 // pred_check
      _
    $region15: #{tpu_custom_call.1} parent=1 // pred_check_branch
      %48 = sbr.rel (0) target = $region17
    $region16: #{tpu_custom_call.1} parent=1 // pred_region
      %49 = dma.done [#allocation3], 256
    $region17: #{tpu_custom_call.1} parent=1 // pred_fallthru
      _
    // Predicated region
    $region18: #{tpu_custom_call.1} parent=1 // pred_check
      _
    $region19: #{tpu_custom_call.1} parent=1 // pred_check_branch
      %51 = sbr.rel (0) target = $region21
    $region20: #{tpu_custom_call.1} parent=1 // pred_region
      %52 = dma.done [#allocation6], 256
    $region21: #{tpu_custom_call.1} parent=1 // pred_fallthru
      _
    // Predicated region
    $region22: #{tpu_custom_call.1} parent=1 // pred_check
      _
    $region23: #{tpu_custom_call.1} parent=1 // pred_check_branch
      %54 = sbr.rel (0) target = $region25
    $region24: #{tpu_custom_call.1} parent=1 // pred_region
      %55 = dma.done [#allocation6], 256
    $region25: #{tpu_custom_call.1} parent=1 // pred_fallthru
      _
    %v56 = vld [vmem:[#allocation2] sm:$0xff]
    %v57 = vld [vmem:[#allocation2 + $0x8] sm:$0xff]
    %v58 = vld [vmem:[#allocation5] sm:$0xff]
    %v59 = vld [vmem:[#allocation5 + $0x8] sm:$0xff]
    %v60 = vld [vmem:[#allocation7] sm:$0xff]
    %v61 = vld [vmem:[#allocation7 + $0x8] sm:$0xff]
    %v62 = vand.u32 2147483647, %v56
    %v63 = vand.u32 2147483647, %v57
    %v64 = vsub.f32 0.0, %v62
    %v65 = vsub.f32 0.0, %v63
    %v66 = vmul.f32 %v64, 1.442695
    %v67 = vpow.pop %v66
    %v68 = vmul.f32 %v65, 1.442695
    %v69 = vpow.pop %v68
    %v70 = vadd.f32 %v67, 1.0
    %v71 = vadd.f32 %v69, 1.0
    %v72 = vrcp.pop %v70
    %v73 = vmul.f32 1.0, %v72
    %v74 = vrcp.pop %v71
    %v75 = vmul.f32 1.0, %v74
    %vm76 = vcmp.ge.f32.partialorder %v56, 0.0
    %vm77 = vcmp.ge.f32.partialorder %v57, 0.0
    %v78 = vmul.f32 %v67, %v73
    %v79 = vmul.f32 %v69, %v75
    %v80 = vsel %vm76, %v73, %v78
    %v81 = vsel %vm77, %v75, %v79
    %v82 = vmul.f32 %v80, %v80
    %v83 = vmul.f32 %v81, %v81
    %v84 = vmul.f32 %v82, 0.75
    %v85 = vmul.f32 %v83, 0.75
    %v86 = vsub.f32 1.0, %v60
    %v87 = vsub.f32 1.0, %v61
    %v88 = vmul.f32 %v84, %v86
    %v89 = vmul.f32 %v85, %v87
    %v90 = vmul.f32 %v58, %v60
    %v91 = vmul.f32 %v59, %v61
    %v92 = vadd.f32 %v88, %v90
    %v93 = vadd.f32 %v89, %v91
    %v94 = vmax.f32 %v56, 0.0
    %v95 = vmax.f32 %v57, 0.0
    %v96 = vmul.f32 %v56, %v58
    %v97 = vmul.f32 %v57, %v59
    %v98 = vsub.f32 %v94, %v96
    %v99 = vsub.f32 %v95, %v97
    %v100 = vadd.f32 %v67, 1.0
    %v101 = vlog2.pop %v100
    %v102 = vmul.f32 %v101, 0.6931472
    %v103 = vmul.f32 -0.5, %v67
    %v104 = vadd.f32 %v103, 1.0
    %v105 = vmul.f32 %v104, %v67
    %v106 = vand.u32 2147483647, %v67
    %vm107 = vcmp.lt.f32.partialorder %v106, 0.0004427343
    %v108 = vsel %vm107, %v105, %v102
    %v109 = vadd.f32 %v69, 1.0
    %v110 = vlog2.pop %v109
    %v111 = vmul.f32 %v110, 0.6931472
    %v112 = vmul.f32 -0.5, %v69
    %v113 = vadd.f32 %v112, 1.0
    %v114 = vmul.f32 %v113, %v69
    %v115 = vand.u32 2147483647, %v69
    %vm116 = vcmp.lt.f32.partialorder %v115, 0.0004427343
    %v117 = vsel %vm116, %v114, %v111
    %v118 = vadd.f32 %v98, %v108
    %v119 = vadd.f32 %v99, %v117
    %v120 = vmul.f32 %v118, %v92
    %v121 = vmul.f32 %v119, %v93
    %v122 = vadd.f32 %v120, %v121
    %123 = vst [vmem:[#allocation8] sm:$0xff] %v122
    // Predicated region
    $region26: #{tpu_custom_call.1} parent=1 // pred_check
      _
    $region27: #{tpu_custom_call.1} parent=1 // pred_check_branch
      %125 = sbr.rel (0) target = $region29
    $region28: #{tpu_custom_call.1} parent=1 // pred_region
      %s127 = ssub.s32 128, 128
      %128 = vsyncadd [#allocation4], %s127
      %s130 = sshll.u32 [#allocation8], 4
      %s131 = int_to_ptr.vmem [resolvable:$true] %s130
      %133 = dma.vmem_to_hbm [thread:$0]  %s131, 128, %s3, [#allocation4]
    $region29: #{tpu_custom_call.1} parent=1 // pred_fallthru
      _
    // Predicated region
    $region30: #{tpu_custom_call.1} parent=1 // pred_check
      _
    $region31: #{tpu_custom_call.1} parent=1 // pred_check_branch
      %135 = sbr.rel (0) target = $region33
    $region32: #{tpu_custom_call.1} parent=1 // pred_region
      %136 = dma.done [#allocation4], 128
    $region33: #{tpu_custom_call.1} parent=1 // pred_fallthru
      _
    %137 = vsyncpa [#allocation3], 1
    %138 = vsyncpa [#allocation6], 1
    %139 = vsyncpa [#allocation4], 1

</llo_original>
